<compile_context>
chip_gen: v7x
topology: tpu7x:2x2x1
jax: 0.10.0
libtpu: 0.0.40
codegen_flags: <defaults>
</compile_context>

<pallas_src>
import functools

import jax
import jax.numpy as jnp
from jax.experimental import pallas as pl
from jax.experimental.pallas import tpu as pltpu

LANES = 128
SUBLANES = 8


def _round_up(n, m):
    return ((n + m - 1) // m) * m


def _linear(w_ref, b_ref, in_blocks, relu):
    """out_blocks[o] = relu(sum_i w[o,i] * in_blocks[i] + b[o]); pure VPU FMAs."""
    out_f, in_f = w_ref.shape
    out_blocks = []
    for o in range(out_f):
        acc = in_blocks[0] * w_ref[o, 0]
        for i in range(1, in_f):
            acc = acc + in_blocks[i] * w_ref[o, i]
        acc = acc + b_ref[o]
        if relu:
            acc = jnp.maximum(acc, 0.0)
        out_blocks.append(acc)
    return out_blocks


def iris_mlp_kernel(x_ref, w1_ref, b1_ref, w2_ref, b2_ref, w3_ref, b3_ref, o_ref):
    # x_ref: (2, TILE_R, 128) VMEM tile; o_ref: (3, TILE_R, 128) VMEM tile.
    # w*_ref: (out, in) f32 SMEM; b*_ref: (out,) f32 SMEM (scalar reads).
    in_f = x_ref.shape[0]
    x_blocks = [x_ref[i] for i in range(in_f)]        # dense (TILE_R, 128) slabs
    h1 = _linear(w1_ref, b1_ref, x_blocks, relu=True)
    h2 = _linear(w2_ref, b2_ref, h1, relu=True)
    h3 = _linear(w3_ref, b3_ref, h2, relu=False)
    for o, blk in enumerate(h3):
        o_ref[o] = blk.astype(o_ref.dtype)            # full-tile unmasked store


@functools.partial(jax.jit, static_argnames=("tile_r",))
def iris_forward(x, params, tile_r=2048):
    """x: (batch, 2) float32 -> (batch, 3) float32."""
    w1, b1, w2, b2, w3, b3 = params
    batch, in_f = x.shape
    out_f = w3.shape[0]

    # Feature-major 3-D layout: batch -> (rows, 128 lanes), rows on sublanes.
    rows = pl.cdiv(batch, LANES)
    tile_r = min(tile_r, _round_up(rows, SUBLANES))   # tile rows, multiple of 8
    padded_rows = _round_up(rows, tile_r)
    padded = padded_rows * LANES

    xt = x.T                                          # (in_f, batch)
    if padded != batch:
        xt = jnp.pad(xt, ((0, 0), (0, padded - batch)))
    x3 = xt.reshape(in_f, padded_rows, LANES)         # layout-compatible reshape

    grid = (padded_rows // tile_r,)
    smem = pl.BlockSpec(memory_space=pltpu.MemorySpace.SMEM)

    # Advisory scheduling hint: kernel is HBM-bound, ~(2+3)*4 bytes / element.
    cost = pl.CostEstimate(
        flops=padded * (2 * 4 * 2 + 2 * 2 * 4 + 2 * 3 * 2),
        transcendentals=0,
        bytes_accessed=4 * padded * (in_f + out_f),
    )

    out3 = pl.pallas_call(
        iris_mlp_kernel,
        out_shape=jax.ShapeDtypeStruct((out_f, padded_rows, LANES), jnp.float32),
        grid=grid,
        in_specs=[
            pl.BlockSpec((in_f, tile_r, LANES), lambda i: (0, i, 0)),  # x tile
            smem, smem,                                                # w1, b1
            smem, smem,                                                # w2, b2
            smem, smem,                                                # w3, b3
        ],
        out_specs=pl.BlockSpec((out_f, tile_r, LANES), lambda i: (0, i, 0)),
        compiler_params=pltpu.CompilerParams(
            dimension_semantics=("parallel",),          # shard over v7x's 2 TCs
            vmem_limit_bytes=32 * 1024 * 1024,          # safe on v5e/v6e/v7x
        ),
        cost_estimate=cost,
    )(x3, w1, b1, w2, b2, w3, b3)

    # Padded columns computed garbage-but-finite values; slice them off (fused).
    return out3.reshape(out_f, padded)[:, :batch].T


def init_params(key):
    """Deterministic init matching PyTorch Linear layer shapes (W is (out, in))."""
    ks = jax.random.split(key, 6)

    def lin(kw, kb, fan_in, fan_out):
        bound = 1.0 / float(jnp.sqrt(float(fan_in)))
        w = jax.random.uniform(kw, (fan_out, fan_in), jnp.float32, -bound, bound)
        b = jax.random.uniform(kb, (fan_out,), jnp.float32, -bound, bound)
        return w, b

    w1, b1 = lin(ks[0], ks[1], 2, 4)
    w2, b2 = lin(ks[2], ks[3], 4, 2)
    w3, b3 = lin(ks[4], ks[5], 2, 3)
    return (w1, b1, w2, b2, w3, b3)


def iris_forward_ref(x, params):
    w1, b1, w2, b2, w3, b3 = params
    h1 = jnp.maximum(x @ w1.T + b1, 0.0)
    h2 = jnp.maximum(h1 @ w2.T + b2, 0.0)
    return h2 @ w3.T + b3


if __name__ == "__main__":
    key = jax.random.PRNGKey(0)
    k_param, k_x1, k_x2 = jax.random.split(key, 3)
    params = init_params(k_param)

    # Small demo batch (single grid step).
    x_small = jax.random.normal(k_x1, (256, 2), dtype=jnp.float32)
    out_small = jax.block_until_ready(iris_forward(x_small, params))
    ref_small = iris_forward_ref(x_small, params)
    assert out_small.shape == (256, 3)
    assert jnp.allclose(out_small, ref_small, atol=1e-5, rtol=1e-5)

    # Multi-step grid + non-multiple-of-tile batch (exercises padding/index_map).
    x_big = jax.random.normal(k_x2, (2500, 2), dtype=jnp.float32)
    out_big = jax.block_until_ready(iris_forward(x_big, params, tile_r=8))
    ref_big = iris_forward_ref(x_big, params)
    assert out_big.shape == (2500, 3)
    assert jnp.allclose(out_big, ref_big, atol=1e-5, rtol=1e-5)

    print("KERNEL_OK")
</pallas_src>

<mosaic_0001>
module attributes {stable_mosaic.version = 11 : i64} {
  func.func @iris_mlp_kernel(%arg0: i32, %arg1: memref<2x8x128xf32, #tpu.memory_space<vmem>>, %arg2: memref<4x2xf32, #tpu.memory_space<smem>>, %arg3: memref<4xf32, #tpu.memory_space<smem>>, %arg4: memref<2x4xf32, #tpu.memory_space<smem>>, %arg5: memref<2xf32, #tpu.memory_space<smem>>, %arg6: memref<3x2xf32, #tpu.memory_space<smem>>, %arg7: memref<3xf32, #tpu.memory_space<smem>>, %arg8: memref<3x8x128xf32, #tpu.memory_space<vmem>>) attributes {dimension_semantics = [#tpu.dimension_semantics<parallel>], iteration_bounds = array<i64: 1>, scalar_prefetch = 0 : i64, scratch_operands = 0 : i64, tpu.core_type = #tpu.core_type<tc>, window_params = [{transform_indices = @transform_0, window_bounds = array<i64: 2, 8, 128>}, {transform_indices = @transform_1, window_bounds = array<i64: 4, 2>}, {transform_indices = @transform_2, window_bounds = array<i64: 4>}, {transform_indices = @transform_3, window_bounds = array<i64: 2, 4>}, {transform_indices = @transform_4, window_bounds = array<i64: 2>}, {transform_indices = @transform_5, window_bounds = array<i64: 3, 2>}, {transform_indices = @transform_6, window_bounds = array<i64: 3>}, {transform_indices = @transform_7, window_bounds = array<i64: 3, 8, 128>}]} {
    %c0 = arith.constant 0 : index
    %c0_0 = arith.constant 0 : index
    %c0_1 = arith.constant 0 : index
    %0 = vector.load %arg1[%c0, %c0_0, %c0_1] : memref<2x8x128xf32, #tpu.memory_space<vmem>>, vector<1x8x128xf32>
    %1 = vector.shape_cast %0 : vector<1x8x128xf32> to vector<8x128xf32>
    %c1 = arith.constant 1 : index
    %c0_2 = arith.constant 0 : index
    %c0_3 = arith.constant 0 : index
    %2 = vector.load %arg1[%c1, %c0_2, %c0_3] : memref<2x8x128xf32, #tpu.memory_space<vmem>>, vector<1x8x128xf32>
    %3 = vector.shape_cast %2 : vector<1x8x128xf32> to vector<8x128xf32>
    %c0_4 = arith.constant 0 : index
    %c0_5 = arith.constant 0 : index
    %4 = memref.load %arg2[%c0_4, %c0_5] : memref<4x2xf32, #tpu.memory_space<smem>>
    %5 = vector.broadcast %4 : f32 to vector<8x128xf32>
    %6 = arith.mulf %1, %5 : vector<8x128xf32>
    %c0_6 = arith.constant 0 : index
    %c1_7 = arith.constant 1 : index
    %7 = memref.load %arg2[%c0_6, %c1_7] : memref<4x2xf32, #tpu.memory_space<smem>>
    %8 = vector.broadcast %7 : f32 to vector<8x128xf32>
    %9 = arith.mulf %3, %8 : vector<8x128xf32>
    %10 = arith.addf %6, %9 : vector<8x128xf32>
    %c0_8 = arith.constant 0 : index
    %11 = memref.load %arg3[%c0_8] : memref<4xf32, #tpu.memory_space<smem>>
    %12 = vector.broadcast %11 : f32 to vector<8x128xf32>
    %13 = arith.addf %10, %12 : vector<8x128xf32>
    %cst = arith.constant 0.000000e+00 : f32
    %14 = vector.broadcast %cst : f32 to vector<8x128xf32>
    %15 = arith.maximumf %13, %14 : vector<8x128xf32>
    %c1_9 = arith.constant 1 : index
    %c0_10 = arith.constant 0 : index
    %16 = memref.load %arg2[%c1_9, %c0_10] : memref<4x2xf32, #tpu.memory_space<smem>>
    %17 = vector.broadcast %16 : f32 to vector<8x128xf32>
    %18 = arith.mulf %1, %17 : vector<8x128xf32>
    %c1_11 = arith.constant 1 : index
    %c1_12 = arith.constant 1 : index
    %19 = memref.load %arg2[%c1_11, %c1_12] : memref<4x2xf32, #tpu.memory_space<smem>>
    %20 = vector.broadcast %19 : f32 to vector<8x128xf32>
    %21 = arith.mulf %3, %20 : vector<8x128xf32>
    %22 = arith.addf %18, %21 : vector<8x128xf32>
    %c1_13 = arith.constant 1 : index
    %23 = memref.load %arg3[%c1_13] : memref<4xf32, #tpu.memory_space<smem>>
    %24 = vector.broadcast %23 : f32 to vector<8x128xf32>
    %25 = arith.addf %22, %24 : vector<8x128xf32>
    %cst_14 = arith.constant 0.000000e+00 : f32
    %26 = vector.broadcast %cst_14 : f32 to vector<8x128xf32>
    %27 = arith.maximumf %25, %26 : vector<8x128xf32>
    %c2 = arith.constant 2 : index
    %c0_15 = arith.constant 0 : index
    %28 = memref.load %arg2[%c2, %c0_15] : memref<4x2xf32, #tpu.memory_space<smem>>
    %29 = vector.broadcast %28 : f32 to vector<8x128xf32>
    %30 = arith.mulf %1, %29 : vector<8x128xf32>
    %c2_16 = arith.constant 2 : index
    %c1_17 = arith.constant 1 : index
    %31 = memref.load %arg2[%c2_16, %c1_17] : memref<4x2xf32, #tpu.memory_space<smem>>
    %32 = vector.broadcast %31 : f32 to vector<8x128xf32>
    %33 = arith.mulf %3, %32 : vector<8x128xf32>
    %34 = arith.addf %30, %33 : vector<8x128xf32>
    %c2_18 = arith.constant 2 : index
    %35 = memref.load %arg3[%c2_18] : memref<4xf32, #tpu.memory_space<smem>>
    %36 = vector.broadcast %35 : f32 to vector<8x128xf32>
    %37 = arith.addf %34, %36 : vector<8x128xf32>
    %cst_19 = arith.constant 0.000000e+00 : f32
    %38 = vector.broadcast %cst_19 : f32 to vector<8x128xf32>
    %39 = arith.maximumf %37, %38 : vector<8x128xf32>
    %c3 = arith.constant 3 : index
    %c0_20 = arith.constant 0 : index
    %40 = memref.load %arg2[%c3, %c0_20] : memref<4x2xf32, #tpu.memory_space<smem>>
    %41 = vector.broadcast %40 : f32 to vector<8x128xf32>
    %42 = arith.mulf %1, %41 : vector<8x128xf32>
    %c3_21 = arith.constant 3 : index
    %c1_22 = arith.constant 1 : index
    %43 = memref.load %arg2[%c3_21, %c1_22] : memref<4x2xf32, #tpu.memory_space<smem>>
    %44 = vector.broadcast %43 : f32 to vector<8x128xf32>
    %45 = arith.mulf %3, %44 : vector<8x128xf32>
    %46 = arith.addf %42, %45 : vector<8x128xf32>
    %c3_23 = arith.constant 3 : index
    %47 = memref.load %arg3[%c3_23] : memref<4xf32, #tpu.memory_space<smem>>
    %48 = vector.broadcast %47 : f32 to vector<8x128xf32>
    %49 = arith.addf %46, %48 : vector<8x128xf32>
    %cst_24 = arith.constant 0.000000e+00 : f32
    %50 = vector.broadcast %cst_24 : f32 to vector<8x128xf32>
    %51 = arith.maximumf %49, %50 : vector<8x128xf32>
    %c0_25 = arith.constant 0 : index
    %c0_26 = arith.constant 0 : index
    %52 = memref.load %arg4[%c0_25, %c0_26] : memref<2x4xf32, #tpu.memory_space<smem>>
    %53 = vector.broadcast %52 : f32 to vector<8x128xf32>
    %54 = arith.mulf %15, %53 : vector<8x128xf32>
    %c0_27 = arith.constant 0 : index
    %c1_28 = arith.constant 1 : index
    %55 = memref.load %arg4[%c0_27, %c1_28] : memref<2x4xf32, #tpu.memory_space<smem>>
    %56 = vector.broadcast %55 : f32 to vector<8x128xf32>
    %57 = arith.mulf %27, %56 : vector<8x128xf32>
    %58 = arith.addf %54, %57 : vector<8x128xf32>
    %c0_29 = arith.constant 0 : index
    %c2_30 = arith.constant 2 : index
    %59 = memref.load %arg4[%c0_29, %c2_30] : memref<2x4xf32, #tpu.memory_space<smem>>
    %60 = vector.broadcast %59 : f32 to vector<8x128xf32>
    %61 = arith.mulf %39, %60 : vector<8x128xf32>
    %62 = arith.addf %58, %61 : vector<8x128xf32>
    %c0_31 = arith.constant 0 : index
    %c3_32 = arith.constant 3 : index
    %63 = memref.load %arg4[%c0_31, %c3_32] : memref<2x4xf32, #tpu.memory_space<smem>>
    %64 = vector.broadcast %63 : f32 to vector<8x128xf32>
    %65 = arith.mulf %51, %64 : vector<8x128xf32>
    %66 = arith.addf %62, %65 : vector<8x128xf32>
    %c0_33 = arith.constant 0 : index
    %67 = memref.load %arg5[%c0_33] : memref<2xf32, #tpu.memory_space<smem>>
    %68 = vector.broadcast %67 : f32 to vector<8x128xf32>
    %69 = arith.addf %66, %68 : vector<8x128xf32>
    %cst_34 = arith.constant 0.000000e+00 : f32
    %70 = vector.broadcast %cst_34 : f32 to vector<8x128xf32>
    %71 = arith.maximumf %69, %70 : vector<8x128xf32>
    %c1_35 = arith.constant 1 : index
    %c0_36 = arith.constant 0 : index
    %72 = memref.load %arg4[%c1_35, %c0_36] : memref<2x4xf32, #tpu.memory_space<smem>>
    %73 = vector.broadcast %72 : f32 to vector<8x128xf32>
    %74 = arith.mulf %15, %73 : vector<8x128xf32>
    %c1_37 = arith.constant 1 : index
    %c1_38 = arith.constant 1 : index
    %75 = memref.load %arg4[%c1_37, %c1_38] : memref<2x4xf32, #tpu.memory_space<smem>>
    %76 = vector.broadcast %75 : f32 to vector<8x128xf32>
    %77 = arith.mulf %27, %76 : vector<8x128xf32>
    %78 = arith.addf %74, %77 : vector<8x128xf32>
    %c1_39 = arith.constant 1 : index
    %c2_40 = arith.constant 2 : index
    %79 = memref.load %arg4[%c1_39, %c2_40] : memref<2x4xf32, #tpu.memory_space<smem>>
    %80 = vector.broadcast %79 : f32 to vector<8x128xf32>
    %81 = arith.mulf %39, %80 : vector<8x128xf32>
    %82 = arith.addf %78, %81 : vector<8x128xf32>
    %c1_41 = arith.constant 1 : index
    %c3_42 = arith.constant 3 : index
    %83 = memref.load %arg4[%c1_41, %c3_42] : memref<2x4xf32, #tpu.memory_space<smem>>
    %84 = vector.broadcast %83 : f32 to vector<8x128xf32>
    %85 = arith.mulf %51, %84 : vector<8x128xf32>
    %86 = arith.addf %82, %85 : vector<8x128xf32>
    %c1_43 = arith.constant 1 : index
    %87 = memref.load %arg5[%c1_43] : memref<2xf32, #tpu.memory_space<smem>>
    %88 = vector.broadcast %87 : f32 to vector<8x128xf32>
    %89 = arith.addf %86, %88 : vector<8x128xf32>
    %cst_44 = arith.constant 0.000000e+00 : f32
    %90 = vector.broadcast %cst_44 : f32 to vector<8x128xf32>
    %91 = arith.maximumf %89, %90 : vector<8x128xf32>
    %c0_45 = arith.constant 0 : index
    %c0_46 = arith.constant 0 : index
    %92 = memref.load %arg6[%c0_45, %c0_46] : memref<3x2xf32, #tpu.memory_space<smem>>
    %93 = vector.broadcast %92 : f32 to vector<8x128xf32>
    %94 = arith.mulf %71, %93 : vector<8x128xf32>
    %c0_47 = arith.constant 0 : index
    %c1_48 = arith.constant 1 : index
    %95 = memref.load %arg6[%c0_47, %c1_48] : memref<3x2xf32, #tpu.memory_space<smem>>
    %96 = vector.broadcast %95 : f32 to vector<8x128xf32>
    %97 = arith.mulf %91, %96 : vector<8x128xf32>
    %98 = arith.addf %94, %97 : vector<8x128xf32>
    %c0_49 = arith.constant 0 : index
    %99 = memref.load %arg7[%c0_49] : memref<3xf32, #tpu.memory_space<smem>>
    %100 = vector.broadcast %99 : f32 to vector<8x128xf32>
    %101 = arith.addf %98, %100 : vector<8x128xf32>
    %c1_50 = arith.constant 1 : index
    %c0_51 = arith.constant 0 : index
    %102 = memref.load %arg6[%c1_50, %c0_51] : memref<3x2xf32, #tpu.memory_space<smem>>
    %103 = vector.broadcast %102 : f32 to vector<8x128xf32>
    %104 = arith.mulf %71, %103 : vector<8x128xf32>
    %c1_52 = arith.constant 1 : index
    %c1_53 = arith.constant 1 : index
    %105 = memref.load %arg6[%c1_52, %c1_53] : memref<3x2xf32, #tpu.memory_space<smem>>
    %106 = vector.broadcast %105 : f32 to vector<8x128xf32>
    %107 = arith.mulf %91, %106 : vector<8x128xf32>
    %108 = arith.addf %104, %107 : vector<8x128xf32>
    %c1_54 = arith.constant 1 : index
    %109 = memref.load %arg7[%c1_54] : memref<3xf32, #tpu.memory_space<smem>>
    %110 = vector.broadcast %109 : f32 to vector<8x128xf32>
    %111 = arith.addf %108, %110 : vector<8x128xf32>
    %c2_55 = arith.constant 2 : index
    %c0_56 = arith.constant 0 : index
    %112 = memref.load %arg6[%c2_55, %c0_56] : memref<3x2xf32, #tpu.memory_space<smem>>
    %113 = vector.broadcast %112 : f32 to vector<8x128xf32>
    %114 = arith.mulf %71, %113 : vector<8x128xf32>
    %c2_57 = arith.constant 2 : index
    %c1_58 = arith.constant 1 : index
    %115 = memref.load %arg6[%c2_57, %c1_58] : memref<3x2xf32, #tpu.memory_space<smem>>
    %116 = vector.broadcast %115 : f32 to vector<8x128xf32>
    %117 = arith.mulf %91, %116 : vector<8x128xf32>
    %118 = arith.addf %114, %117 : vector<8x128xf32>
    %c2_59 = arith.constant 2 : index
    %119 = memref.load %arg7[%c2_59] : memref<3xf32, #tpu.memory_space<smem>>
    %120 = vector.broadcast %119 : f32 to vector<8x128xf32>
    %121 = arith.addf %118, %120 : vector<8x128xf32>
    %c0_60 = arith.constant 0 : index
    %c0_61 = arith.constant 0 : index
    %c0_62 = arith.constant 0 : index
    %122 = vector.load %arg8[%c0_60, %c0_61, %c0_62] : memref<3x8x128xf32, #tpu.memory_space<vmem>>, vector<1x8x128xf32>
    %123 = vector.shape_cast %122 : vector<1x8x128xf32> to vector<8x128xf32>
    %124 = vector.shape_cast %101 : vector<8x128xf32> to vector<1x8x128xf32>
    tpu.vector_store %arg8[%c0_60, %c0_61, %c0_62], %124 {strides = array<i32>} : memref<3x8x128xf32, #tpu.memory_space<vmem>>, vector<1x8x128xf32>,
    %c1_63 = arith.constant 1 : index
    %c0_64 = arith.constant 0 : index
    %c0_65 = arith.constant 0 : index
    %125 = vector.load %arg8[%c1_63, %c0_64, %c0_65] : memref<3x8x128xf32, #tpu.memory_space<vmem>>, vector<1x8x128xf32>
    %126 = vector.shape_cast %125 : vector<1x8x128xf32> to vector<8x128xf32>
    %127 = vector.shape_cast %111 : vector<8x128xf32> to vector<1x8x128xf32>
    tpu.vector_store %arg8[%c1_63, %c0_64, %c0_65], %127 {strides = array<i32>} : memref<3x8x128xf32, #tpu.memory_space<vmem>>, vector<1x8x128xf32>,
    %c2_66 = arith.constant 2 : index
    %c0_67 = arith.constant 0 : index
    %c0_68 = arith.constant 0 : index
    %128 = vector.load %arg8[%c2_66, %c0_67, %c0_68] : memref<3x8x128xf32, #tpu.memory_space<vmem>>, vector<1x8x128xf32>
    %129 = vector.shape_cast %128 : vector<1x8x128xf32> to vector<8x128xf32>
    %130 = vector.shape_cast %121 : vector<8x128xf32> to vector<1x8x128xf32>
    tpu.vector_store %arg8[%c2_66, %c0_67, %c0_68], %130 {strides = array<i32>} : memref<3x8x128xf32, #tpu.memory_space<vmem>>, vector<1x8x128xf32>,
    return
  }
  func.func @transform_0(%arg0: i32) -> (i32, i32, i32) {
    %c0_i32 = arith.constant 0 : i32
    %c0_i32_0 = arith.constant 0 : i32
    %c0_i32_1 = arith.constant 0 : i32
    return %c0_i32, %arg0, %c0_i32_0 : i32, i32, i32
  }
  func.func @transform_1(%arg0: i32) -> (i32, i32) {
    %c0_i32 = arith.constant 0 : i32
    %c0_i32_0 = arith.constant 0 : i32
    %c0_i32_1 = arith.constant 0 : i32
    return %c0_i32, %c0_i32_0 : i32, i32
  }
  func.func @transform_2(%arg0: i32) -> i32 {
    %c0_i32 = arith.constant 0 : i32
    %c0_i32_0 = arith.constant 0 : i32
    return %c0_i32 : i32
  }
  func.func @transform_3(%arg0: i32) -> (i32, i32) {
    %c0_i32 = arith.constant 0 : i32
    %c0_i32_0 = arith.constant 0 : i32
    %c0_i32_1 = arith.constant 0 : i32
    return %c0_i32, %c0_i32_0 : i32, i32
  }
  func.func @transform_4(%arg0: i32) -> i32 {
    %c0_i32 = arith.constant 0 : i32
    %c0_i32_0 = arith.constant 0 : i32
    return %c0_i32 : i32
  }
  func.func @transform_5(%arg0: i32) -> (i32, i32) {
    %c0_i32 = arith.constant 0 : i32
    %c0_i32_0 = arith.constant 0 : i32
    %c0_i32_1 = arith.constant 0 : i32
    return %c0_i32, %c0_i32_0 : i32, i32
  }
  func.func @transform_6(%arg0: i32) -> i32 {
    %c0_i32 = arith.constant 0 : i32
    %c0_i32_0 = arith.constant 0 : i32
    return %c0_i32 : i32
  }
  func.func @transform_7(%arg0: i32) -> (i32, i32, i32) {
    %c0_i32 = arith.constant 0 : i32
    %c0_i32_0 = arith.constant 0 : i32
    %c0_i32_1 = arith.constant 0 : i32
    return %c0_i32, %arg0, %c0_i32_0 : i32, i32, i32
  }
}

</mosaic_0001>

<llo_original>
// kernel: iris_forward.1
$region0: #{iris_forward.1}
  #allocation0 [shape = 'u32[]', space=smem, size = 0x4, offset = 0x4, fixed_abs, tag = 'smem constant byte address 0x4 - core index']
  #allocation1 [shape = 'u32[144,128]{1,0:T(1,128)}', space=vmem, size = 0x12000, scoped, tag = 'internal scratch']
  %s0 = inlined_call_operand.vmem [shape: f32[2,8,128], index: 0, kind: input, shape index: {}]
  %s1 = inlined_call_operand.vmem [shape: f32[4,2], index: 1, kind: input, shape index: {}]
  %s2 = inlined_call_operand.vmem [shape: f32[4], index: 2, kind: input, shape index: {}]
  %s3 = inlined_call_operand.vmem [shape: f32[2,4], index: 3, kind: input, shape index: {}]
  %s4 = inlined_call_operand.vmem [shape: f32[2], index: 4, kind: input, shape index: {}]
  %s5 = inlined_call_operand.vmem [shape: f32[3,2], index: 5, kind: input, shape index: {}]
  %s6 = inlined_call_operand.vmem [shape: f32[3], index: 6, kind: input, shape index: {}]
  %s7 = inlined_call_operand.vmem [shape: f32[3,8,128], index: 7, kind: output, shape index: {}]
  %s8 = sld [smem:[#allocation0]]
  $region62: #{iris_forward.1} parent=0
    _
  %s10 = ssub.s32 1, %s8
  %s11 = scalar_select 0, %s10, %s8
  $region1: #{iris_forward.1} parent=0
    #allocation2 [shape = 'u8[2048]{0}', space=smem, size = 0x800, scoped, tag = 'input window, operand 1, single buffered']
    #allocation3 [shape = 's32[1]{0}', space=sflag, size = 0x4, scoped, tag = 'scoped memory for iris_forward.1']
    #allocation4 [shape = 'u8[512]{0}', space=smem, size = 0x200, scoped, tag = 'input window, operand 2, single buffered']
    #allocation5 [shape = 's32[1]{0}', space=sflag, size = 0x4, scoped, tag = 'scoped memory for iris_forward.1']
    #allocation6 [shape = 'u8[1024]{0}', space=smem, size = 0x400, scoped, tag = 'input window, operand 3, single buffered']
    #allocation7 [shape = 'u8[512]{0}', space=smem, size = 0x200, scoped, tag = 'input window, operand 4, single buffered']
    #allocation8 [shape = 's32[1]{0}', space=sflag, size = 0x4, scoped, tag = 'scoped memory for iris_forward.1']
    #allocation9 [shape = 'u8[2048]{0}', space=smem, size = 0x800, scoped, tag = 'input window, operand 5, single buffered']
    #allocation10 [shape = 'u8[512]{0}', space=smem, size = 0x200, scoped, tag = 'input window, operand 6, single buffered']
    #allocation11 [shape = 's32[1]{0}', space=sflag, size = 0x4, scoped, tag = 'scoped memory for iris_forward.1']
    %12 = vsyncpa [#allocation3], 0
    %13 = vsyncpa [#allocation5], 0
    %14 = vsyncpa [#allocation8], 0
    %15 = vsyncpa [#allocation11], 0
    // Predicated region
    $region2: #{iris_forward.1} parent=1 // pred_check
      _
    $region3: #{iris_forward.1} parent=1 // pred_check_branch
      %17 = sbr.rel (0) target = $region5
    $region4: #{iris_forward.1} parent=1 // pred_region
      _
    $region5: #{iris_forward.1} parent=1 // pred_fallthru
      _
    // Predicated region
    $region6: #{iris_forward.1} parent=1 // pred_check
      _
    $region7: #{iris_forward.1} parent=1 // pred_check_branch
      %19 = sbr.rel (0) target = $region9
    $region8: #{iris_forward.1} parent=1 // pred_region
      %s21 = ssub.s32 64, 64
      %22 = vsyncadd [#allocation3], %s21
      %s24 = sshll.u32 %s1, 4
      %s25 = int_to_ptr.vmem [resolvable:$true] %s24
      %27 = dma.vmem_to_smem %s25, 64, [#allocation2], [#allocation3]
    $region9: #{iris_forward.1} parent=1 // pred_fallthru
      _
    // Predicated region
    $region10: #{iris_forward.1} parent=1 // pred_check
      _
    $region11: #{iris_forward.1} parent=1 // pred_check_branch
      %29 = sbr.rel (0) target = $region13
    $region12: #{iris_forward.1} parent=1 // pred_region
      %s31 = ssub.s32 16, 16
      %32 = vsyncadd [#allocation5], %s31
      %s34 = sshll.u32 %s2, 4
      %s35 = int_to_ptr.vmem [resolvable:$true] %s34
      %37 = dma.vmem_to_smem %s35, 16, [#allocation4], [#allocation5]
    $region13: #{iris_forward.1} parent=1 // pred_fallthru
      _
    // Predicated region
    $region14: #{iris_forward.1} parent=1 // pred_check
      _
    $region15: #{iris_forward.1} parent=1 // pred_check_branch
      %39 = sbr.rel (0) target = $region17
    $region16: #{iris_forward.1} parent=1 // pred_region
      %s41 = ssub.s32 32, 32
      %42 = vsyncadd [#allocation5], %s41
      %s44 = sshll.u32 %s3, 4
      %s45 = int_to_ptr.vmem [resolvable:$true] %s44
      %47 = dma.vmem_to_smem %s45, 32, [#allocation6], [#allocation5]
    $region17: #{iris_forward.1} parent=1 // pred_fallthru
      _
    // Predicated region
    $region18: #{iris_forward.1} parent=1 // pred_check
      _
    $region19: #{iris_forward.1} parent=1 // pred_check_branch
      %49 = sbr.rel (0) target = $region21
    $region20: #{iris_forward.1} parent=1 // pred_region
      %s51 = ssub.s32 16, 16
      %52 = vsyncadd [#allocation8], %s51
      %s54 = sshll.u32 %s4, 4
      %s55 = int_to_ptr.vmem [resolvable:$true] %s54
      %57 = dma.vmem_to_smem %s55, 16, [#allocation7], [#allocation8]
    $region21: #{iris_forward.1} parent=1 // pred_fallthru
      _
    // Predicated region
    $region22: #{iris_forward.1} parent=1 // pred_check
      _
    $region23: #{iris_forward.1} parent=1 // pred_check_branch
      %59 = sbr.rel (0) target = $region25
    $region24: #{iris_forward.1} parent=1 // pred_region
      %s61 = ssub.s32 64, 64
      %62 = vsyncadd [#allocation8], %s61
      %s64 = sshll.u32 %s5, 4
      %s65 = int_to_ptr.vmem [resolvable:$true] %s64
      %67 = dma.vmem_to_smem %s65, 64, [#allocation9], [#allocation8]
    $region25: #{iris_forward.1} parent=1 // pred_fallthru
      _
    // Predicated region
    $region26: #{iris_forward.1} parent=1 // pred_check
      _
    $region27: #{iris_forward.1} parent=1 // pred_check_branch
      %69 = sbr.rel (0) target = $region29
    $region28: #{iris_forward.1} parent=1 // pred_region
      %s71 = ssub.s32 16, 16
      %72 = vsyncadd [#allocation11], %s71
      %s74 = sshll.u32 %s6, 4
      %s75 = int_to_ptr.vmem [resolvable:$true] %s74
      %77 = dma.vmem_to_smem %s75, 16, [#allocation10], [#allocation11]
    $region29: #{iris_forward.1} parent=1 // pred_fallthru
      _
    // Predicated region
    $region30: #{iris_forward.1} parent=1 // pred_check
      _
    $region31: #{iris_forward.1} parent=1 // pred_check_branch
      %79 = sbr.rel (0) target = $region33
    $region32: #{iris_forward.1} parent=1 // pred_region
      %80 = dma.done [#allocation3], 64
    $region33: #{iris_forward.1} parent=1 // pred_fallthru
      _
    // Predicated region
    $region34: #{iris_forward.1} parent=1 // pred_check
      _
    $region35: #{iris_forward.1} parent=1 // pred_check_branch
      %82 = sbr.rel (0) target = $region37
    $region36: #{iris_forward.1} parent=1 // pred_region
      %83 = dma.done [#allocation5], 16
    $region37: #{iris_forward.1} parent=1 // pred_fallthru
      _
    // Predicated region
    $region38: #{iris_forward.1} parent=1 // pred_check
      _
    $region39: #{iris_forward.1} parent=1 // pred_check_branch
      %85 = sbr.rel (0) target = $region41
    $region40: #{iris_forward.1} parent=1 // pred_region
      %86 = dma.done [#allocation5], 32
    $region41: #{iris_forward.1} parent=1 // pred_fallthru
      _
    // Predicated region
    $region42: #{iris_forward.1} parent=1 // pred_check
      _
    $region43: #{iris_forward.1} parent=1 // pred_check_branch
      %88 = sbr.rel (0) target = $region45
    $region44: #{iris_forward.1} parent=1 // pred_region
      %89 = dma.done [#allocation8], 16
    $region45: #{iris_forward.1} parent=1 // pred_fallthru
      _
    // Predicated region
    $region46: #{iris_forward.1} parent=1 // pred_check
      _
    $region47: #{iris_forward.1} parent=1 // pred_check_branch
      %91 = sbr.rel (0) target = $region49
    $region48: #{iris_forward.1} parent=1 // pred_region
      %92 = dma.done [#allocation8], 64
    $region49: #{iris_forward.1} parent=1 // pred_fallthru
      _
    // Predicated region
    $region50: #{iris_forward.1} parent=1 // pred_check
      _
    $region51: #{iris_forward.1} parent=1 // pred_check_branch
      %94 = sbr.rel (0) target = $region53
    $region52: #{iris_forward.1} parent=1 // pred_region
      %95 = dma.done [#allocation11], 16
    $region53: #{iris_forward.1} parent=1 // pred_fallthru
      _
    %96 = sfence
    %v97 = vld [vmem:[%s0] sm:$0xff]
    %s98 = scalar_lea.vmem %s0, 8
    %v99 = vld [vmem:[%s98] sm:$0xff]
    %s100 = sld [smem:[#allocation2]]
    %v101 = vstv %s100
    %v102 = vmul.f32 %v97, %v101
    %s103 = sld [smem:[#allocation2 + $0x1]]
    %v104 = vstv %s103
    %v105 = vmul.f32 %v99, %v104
    %v106 = vadd.f32 %v102, %v105
    %s107 = sld [smem:[#allocation4]]
    %v108 = vstv %s107
    %v109 = vadd.f32 %v106, %v108
    %v110 = vmax.f32 %v109, 0.0
    %s111 = sld [smem:[#allocation2 + $0x80]]
    %v112 = vstv %s111
    %v113 = vmul.f32 %v97, %v112
    %s114 = sld [smem:[#allocation2 + $0x81]]
    %v115 = vstv %s114
    %v116 = vmul.f32 %v99, %v115
    %v117 = vadd.f32 %v113, %v116
    %s118 = sld [smem:[#allocation4 + $0x1]]
    %v119 = vstv %s118
    %v120 = vadd.f32 %v117, %v119
    %v121 = vmax.f32 %v120, 0.0
    %s122 = sld [smem:[#allocation2 + $0x100]]
    %v123 = vstv %s122
    %v124 = vmul.f32 %v97, %v123
    %s125 = sld [smem:[#allocation2 + $0x101]]
    %v126 = vstv %s125
    %v127 = vmul.f32 %v99, %v126
    %v128 = vadd.f32 %v124, %v127
    %s129 = sld [smem:[#allocation4 + $0x2]]
    %v130 = vstv %s129
    %v131 = vadd.f32 %v128, %v130
    %v132 = vmax.f32 %v131, 0.0
    %s133 = sld [smem:[#allocation2 + $0x180]]
    %v134 = vstv %s133
    %v135 = vmul.f32 %v97, %v134
    %s136 = sld [smem:[#allocation2 + $0x181]]
    %v137 = vstv %s136
    %v138 = vmul.f32 %v99, %v137
    %v139 = vadd.f32 %v135, %v138
    %s140 = sld [smem:[#allocation4 + $0x3]]
    %v141 = vstv %s140
    %v142 = vadd.f32 %v139, %v141
    %v143 = vmax.f32 %v142, 0.0
    %s144 = sld [smem:[#allocation6]]
    %v145 = vstv %s144
    %v146 = vmul.f32 %v110, %v145
    %s147 = sld [smem:[#allocation6 + $0x1]]
    %v148 = vstv %s147
    %v149 = vmul.f32 %v121, %v148
    %v150 = vadd.f32 %v146, %v149
    %s151 = sld [smem:[#allocation6 + $0x2]]
    %v152 = vstv %s151
    %v153 = vmul.f32 %v132, %v152
    %v154 = vadd.f32 %v150, %v153
    %s155 = sld [smem:[#allocation6 + $0x3]]
    %v156 = vstv %s155
    %v157 = vmul.f32 %v143, %v156
    %v158 = vadd.f32 %v154, %v157
    %s159 = sld [smem:[#allocation7]]
    %v160 = vstv %s159
    %v161 = vadd.f32 %v158, %v160
    %v162 = vmax.f32 %v161, 0.0
    %s163 = sld [smem:[#allocation6 + $0x80]]
    %v164 = vstv %s163
    %v165 = vmul.f32 %v110, %v164
    %s166 = sld [smem:[#allocation6 + $0x81]]
    %v167 = vstv %s166
    %v168 = vmul.f32 %v121, %v167
    %v169 = vadd.f32 %v165, %v168
    %s170 = sld [smem:[#allocation6 + $0x82]]
    %v171 = vstv %s170
    %v172 = vmul.f32 %v132, %v171
    %v173 = vadd.f32 %v169, %v172
    %s174 = sld [smem:[#allocation6 + $0x83]]
    %v175 = vstv %s174
    %v176 = vmul.f32 %v143, %v175
    %v177 = vadd.f32 %v173, %v176
    %s178 = sld [smem:[#allocation7 + $0x1]]
    %v179 = vstv %s178
    %v180 = vadd.f32 %v177, %v179
    %v181 = vmax.f32 %v180, 0.0
    %s182 = sld [smem:[#allocation9]]
    %v183 = vstv %s182
    %v184 = vmul.f32 %v162, %v183
    %s185 = sld [smem:[#allocation9 + $0x1]]
    %v186 = vstv %s185
    %v187 = vmul.f32 %v181, %v186
    %v188 = vadd.f32 %v184, %v187
    %s189 = sld [smem:[#allocation10]]
    %v190 = vstv %s189
    %v191 = vadd.f32 %v188, %v190
    %s192 = sld [smem:[#allocation9 + $0x80]]
    %v193 = vstv %s192
    %v194 = vmul.f32 %v162, %v193
    %s195 = sld [smem:[#allocation9 + $0x81]]
    %v196 = vstv %s195
    %v197 = vmul.f32 %v181, %v196
    %v198 = vadd.f32 %v194, %v197
    %s199 = sld [smem:[#allocation10 + $0x1]]
    %v200 = vstv %s199
    %v201 = vadd.f32 %v198, %v200
    %s202 = sld [smem:[#allocation9 + $0x100]]
    %v203 = vstv %s202
    %v204 = vmul.f32 %v162, %v203
    %s205 = sld [smem:[#allocation9 + $0x101]]
    %v206 = vstv %s205
    %v207 = vmul.f32 %v181, %v206
    %v208 = vadd.f32 %v204, %v207
    %s209 = sld [smem:[#allocation10 + $0x2]]
    %v210 = vstv %s209
    %v211 = vadd.f32 %v208, %v210
    %212 = vst [vmem:[%s7] sm:$0xff] %v191
    %s213 = scalar_lea.vmem %s7, 8
    %214 = vst [vmem:[%s213] sm:$0xff] %v201
    %s215 = scalar_lea.vmem %s7, 16
    %216 = vst [vmem:[%s215] sm:$0xff] %v211
    // Predicated region
    $region54: #{iris_forward.1} parent=1 // pred_check
      _
    $region55: #{iris_forward.1} parent=1 // pred_check_branch
      %218 = sbr.rel (0) target = $region57
    $region56: #{iris_forward.1} parent=1 // pred_region
      _
    $region57: #{iris_forward.1} parent=1 // pred_fallthru
      _
    // Predicated region
    $region58: #{iris_forward.1} parent=1 // pred_check
      _
    $region59: #{iris_forward.1} parent=1 // pred_check_branch
      %220 = sbr.rel (0) target = $region61
    $region60: #{iris_forward.1} parent=1 // pred_region
      _
    $region61: #{iris_forward.1} parent=1 // pred_fallthru
      _
    %221 = vsyncpa [#allocation3], 1
    %222 = vsyncpa [#allocation5], 1
    %223 = vsyncpa [#allocation8], 1
    %224 = vsyncpa [#allocation11], 1

</llo_original>
